<compile_context>
chip_gen: v7x
topology: tpu7x:2x2x1
jax: 0.10.0
libtpu: 0.0.40
codegen_flags: <defaults>
</compile_context>

<pallas_src>
import functools

import jax
import jax.numpy as jnp
from jax.experimental import pallas as pl
from jax.experimental.pallas import tpu as pltpu

_LANE = 128


def _round_up(x, m):
    return ((x + m - 1) // m) * m


def _batch_tile(batch, tile_b):
    """Lane-aligned batch tile.

    Big tiles amortize the ~0.35us fixed per-grid-step cost; the cap keeps >=2
    grid steps whenever there is enough work so v7x's two TensorCores can split
    the single "parallel" grid axis (large batches naturally give many steps).
    """
    if batch <= _LANE:
        return batch  # single full-extent block (always a legal block shape)
    tile_b = max(_round_up(tile_b, _LANE), _LANE)
    b_lanes = _round_up(batch, _LANE)
    tile = min(tile_b, b_lanes)
    if tile >= b_lanes and b_lanes >= 8 * _LANE:
        # One tile would swallow the batch but there is enough work to share:
        # split into two grid steps for megacore.
        tile = _round_up(pl.cdiv(b_lanes, 2), _LANE)
    return max(tile, _LANE)


def _controller_kernel(ma_ref, x_ref, w1_ref, w2_ref, w3_ref, o_ref, *, compute_dtype):
    # ma_ref : (1,) f32 max_action scalar in SMEM
    # x_ref  : (state_dim, TILE_B)           -- batch on lanes
    # w*_ref : (out_features, in_features)   -- PyTorch Linear layout
    # o_ref  : (action_dim, TILE_B)
    def layer(w_ref, h):
        # MXU matmul (bf16 operands in the fast path), always f32 accumulate;
        # tanh on the EUP (bf16 EUP path on v6e/v7x when compute_dtype=bf16).
        z = jnp.dot(w_ref[...].astype(compute_dtype), h,
                    preferred_element_type=jnp.float32)
        return jnp.tanh(z.astype(compute_dtype))

    h = x_ref[...].astype(compute_dtype)
    h = layer(w1_ref, h)
    h = layer(w2_ref, h)
    h = layer(w3_ref, h)
    # Scale by max_action (one SMEM scalar read) and store lane-dense.
    o_ref[...] = (ma_ref[0] * h).astype(o_ref.dtype)


def controller_forward_tb(x_t, w1, w2, w3, max_action, *,
                          tile_b=32 * 1024, compute_dtype=jnp.float32):
    """Fast path. x_t: (state_dim, B) -> (action_dim, B).

    Zero wrapper copies: no padding and no transposes, so the kernel's own HBM
    traffic (~(state_dim+action_dim)*itemsize bytes per batch row) is the only
    traffic of the whole forward pass.
    """
    state_dim, batch = x_t.shape
    hid1, hid2, action_dim = w1.shape[0], w2.shape[0], w3.shape[0]

    tile = _batch_tile(batch, tile_b)
    grid = (pl.cdiv(batch, tile),)

    ma = jnp.asarray(max_action, dtype=jnp.float32).reshape((1,))
    kernel = functools.partial(_controller_kernel, compute_dtype=compute_dtype)

    itemsize = x_t.dtype.itemsize
    weight_bytes = sum(int(w.size) * w.dtype.itemsize for w in (w1, w2, w3))
    cost = pl.CostEstimate(
        flops=2 * batch * (state_dim * hid1 + hid1 * hid2 + hid2 * action_dim),
        transcendentals=batch * (hid1 + hid2 + action_dim),
        bytes_accessed=batch * (state_dim + action_dim) * itemsize + weight_bytes,
    )

    const_spec = lambda w: pl.BlockSpec(w.shape, lambda i: (0, 0))

    return pl.pallas_call(
        kernel,
        out_shape=jax.ShapeDtypeStruct((action_dim, batch), x_t.dtype),
        grid=grid,
        in_specs=[
            pl.BlockSpec(memory_space=pltpu.MemorySpace.SMEM),  # max_action scalar
            pl.BlockSpec((state_dim, tile), lambda i: (0, i)),  # x, batch on lanes
            const_spec(w1),
            const_spec(w2),
            const_spec(w3),
        ],
        out_specs=pl.BlockSpec((action_dim, tile), lambda i: (0, i)),
        compiler_params=pltpu.CompilerParams(
            dimension_semantics=("parallel",),   # megacore splits the batch axis
            vmem_limit_bytes=32 * 1024 * 1024,   # big tiles fit v5e scope / v7x VMEM
        ),
        cost_estimate=cost,
    )(ma, x_t, w1, w2, w3)


def controller_forward(x, w1, w2, w3, max_action, **kwargs):
    """PyTorch-layout convenience wrapper: x (B, state_dim) -> (B, action_dim).

    The two transposes are extra HBM passes over the I/O arrays; prefer
    controller_forward_tb when the surrounding pipeline can keep activations
    feature-major.
    """
    out_t = controller_forward_tb(x.T, w1, w2, w3, max_action, **kwargs)
    return out_t.T


def torch_like_reference(x, w1, w2, w3, max_action):
    h = jnp.tanh(x @ w1.T)
    h = jnp.tanh(h @ w2.T)
    return max_action * jnp.tanh(h @ w3.T)


if __name__ == "__main__":
    # Small shapes consistent with the module.
    batch, state_dim, action_dim, max_action = 8, 8, 4, 2.0

    key = jax.random.PRNGKey(0)
    kx, k1, k2, k3, kb = jax.random.split(key, 5)

    x = jax.random.normal(kx, (batch, state_dim), dtype=jnp.float32)
    # PyTorch Linear weight layout: (out_features, in_features).
    w1 = (jax.random.uniform(k1, (16, state_dim), dtype=jnp.float32) - 0.5) * 0.5
    w2 = (jax.random.uniform(k2, (6, 16), dtype=jnp.float32) - 0.5) * 0.5
    w3 = (jax.random.uniform(k3, (action_dim, 6), dtype=jnp.float32) - 0.5) * 0.5

    ref = torch_like_reference(x, w1, w2, w3, max_action)

    # 1) PyTorch (B, F) interface, exact f32 compute.
    out = jax.block_until_ready(controller_forward(x, w1, w2, w3, max_action))
    assert out.shape == (batch, action_dim)
    assert jnp.allclose(out, ref, atol=1e-5, rtol=1e-5), "f32 mismatch vs reference"

    # 2) Zero-copy feature-major fast path with bf16 compute (MXU/EUP bf16 path).
    out_t = jax.block_until_ready(
        controller_forward_tb(x.T, w1, w2, w3, max_action,
                              compute_dtype=jnp.bfloat16))
    assert out_t.shape == (action_dim, batch)
    assert jnp.allclose(out_t.T.astype(jnp.float32), ref, atol=3e-2, rtol=3e-2), \
        "bf16 mismatch vs reference"

    # 3) Lane-unaligned batch: ragged last block + >=2 grid steps (megacore).
    big_b = 1000
    xb = jax.random.normal(kb, (big_b, state_dim), dtype=jnp.float32)
    refb = torch_like_reference(xb, w1, w2, w3, max_action)
    outb = jax.block_until_ready(
        controller_forward_tb(xb.T, w1, w2, w3, max_action))
    assert outb.shape == (action_dim, big_b)
    assert jnp.allclose(outb.T, refb, atol=1e-5, rtol=1e-5), "ragged-batch mismatch"

    print("KERNEL_OK")
</pallas_src>

<mosaic_0001>
module attributes {stable_mosaic.version = 11 : i64} {
  func.func @_controller_kernel(%arg0: i32, %arg1: memref<1xf32, #tpu.memory_space<smem>>, %arg2: memref<8x8xf32, #tpu.memory_space<vmem>>, %arg3: memref<16x8xf32, #tpu.memory_space<vmem>>, %arg4: memref<6x16xf32, #tpu.memory_space<vmem>>, %arg5: memref<4x6xf32, #tpu.memory_space<vmem>>, %arg6: memref<4x8xf32, #tpu.memory_space<vmem>>) attributes {dimension_semantics = [#tpu.dimension_semantics<parallel>], iteration_bounds = array<i64: 1>, scalar_prefetch = 0 : i64, scratch_operands = 0 : i64, tpu.core_type = #tpu.core_type<tc>, window_params = [{transform_indices = @transform_0, window_bounds = array<i64: 1>}, {transform_indices = @transform_1, window_bounds = array<i64: 8, 8>}, {pipeline_mode = #tpu.pipeline_mode<synchronous>, transform_indices = @transform_2, window_bounds = array<i64: 16, 8>}, {pipeline_mode = #tpu.pipeline_mode<synchronous>, transform_indices = @transform_3, window_bounds = array<i64: 6, 16>}, {pipeline_mode = #tpu.pipeline_mode<synchronous>, transform_indices = @transform_4, window_bounds = array<i64: 4, 6>}, {transform_indices = @transform_5, window_bounds = array<i64: 4, 8>}]} {
    %c0 = arith.constant 0 : index
    %c0_0 = arith.constant 0 : index
    %0 = vector.load %arg2[%c0, %c0_0] : memref<8x8xf32, #tpu.memory_space<vmem>>, vector<8x8xf32>
    %c0_1 = arith.constant 0 : index
    %c0_2 = arith.constant 0 : index
    %1 = vector.load %arg3[%c0_1, %c0_2] : memref<16x8xf32, #tpu.memory_space<vmem>>, vector<16x8xf32>
    %cst = arith.constant dense<0.000000e+00> : vector<16x8xf32>
    %2 = tpu.matmul %1, %0, %cst {dimension_numbers = #tpu.dot_dimension_numbers<[1], [0], [0], [1], [0, 0, 1, 1], [], []>} : vector<16x8xf32>, vector<8x8xf32>, vector<16x8xf32> -> vector<16x8xf32>
    %3 = math.tanh %2 : vector<16x8xf32>
    %c0_3 = arith.constant 0 : index
    %c0_4 = arith.constant 0 : index
    %4 = vector.load %arg4[%c0_3, %c0_4] : memref<6x16xf32, #tpu.memory_space<vmem>>, vector<6x16xf32>
    %cst_5 = arith.constant dense<0.000000e+00> : vector<6x8xf32>
    %5 = tpu.matmul %4, %3, %cst_5 {dimension_numbers = #tpu.dot_dimension_numbers<[1], [0], [0], [1], [0, 0, 1, 1], [], []>} : vector<6x16xf32>, vector<16x8xf32>, vector<6x8xf32> -> vector<6x8xf32>
    %6 = math.tanh %5 : vector<6x8xf32>
    %c0_6 = arith.constant 0 : index
    %c0_7 = arith.constant 0 : index
    %7 = vector.load %arg5[%c0_6, %c0_7] : memref<4x6xf32, #tpu.memory_space<vmem>>, vector<4x6xf32>
    %cst_8 = arith.constant dense<0.000000e+00> : vector<4x8xf32>
    %8 = tpu.matmul %7, %6, %cst_8 {dimension_numbers = #tpu.dot_dimension_numbers<[1], [0], [0], [1], [0, 0, 1, 1], [], []>} : vector<4x6xf32>, vector<6x8xf32>, vector<4x8xf32> -> vector<4x8xf32>
    %9 = math.tanh %8 : vector<4x8xf32>
    %c0_9 = arith.constant 0 : index
    %10 = memref.load %arg1[%c0_9] : memref<1xf32, #tpu.memory_space<smem>>
    %11 = vector.broadcast %10 : f32 to vector<4x8xf32>
    %12 = arith.mulf %11, %9 : vector<4x8xf32>
    %c0_10 = arith.constant 0 : index
    %c0_11 = arith.constant 0 : index
    %13 = vector.load %arg6[%c0_10, %c0_11] : memref<4x8xf32, #tpu.memory_space<vmem>>, vector<4x8xf32>
    tpu.vector_store %arg6[%c0_10, %c0_11], %12 {strides = array<i32>} : memref<4x8xf32, #tpu.memory_space<vmem>>, vector<4x8xf32>,
    return
  }
  func.func @transform_0(%arg0: i32) -> i32 {
    %c0_i32 = arith.constant 0 : i32
    %c0_i32_0 = arith.constant 0 : i32
    return %c0_i32 : i32
  }
  func.func @transform_1(%arg0: i32) -> (i32, i32) {
    %c0_i32 = arith.constant 0 : i32
    %c0_i32_0 = arith.constant 0 : i32
    return %c0_i32, %arg0 : i32, i32
  }
  func.func @transform_2(%arg0: i32) -> (i32, i32) {
    %c0_i32 = arith.constant 0 : i32
    %c0_i32_0 = arith.constant 0 : i32
    %c0_i32_1 = arith.constant 0 : i32
    return %c0_i32, %c0_i32_0 : i32, i32
  }
  func.func @transform_3(%arg0: i32) -> (i32, i32) {
    %c0_i32 = arith.constant 0 : i32
    %c0_i32_0 = arith.constant 0 : i32
    %c0_i32_1 = arith.constant 0 : i32
    return %c0_i32, %c0_i32_0 : i32, i32
  }
  func.func @transform_4(%arg0: i32) -> (i32, i32) {
    %c0_i32 = arith.constant 0 : i32
    %c0_i32_0 = arith.constant 0 : i32
    %c0_i32_1 = arith.constant 0 : i32
    return %c0_i32, %c0_i32_0 : i32, i32
  }
  func.func @transform_5(%arg0: i32) -> (i32, i32) {
    %c0_i32 = arith.constant 0 : i32
    %c0_i32_0 = arith.constant 0 : i32
    return %c0_i32, %arg0 : i32, i32
  }
}

</mosaic_0001>

<llo_original>
// kernel: tpu_custom_call.1
$region0: #{tpu_custom_call.1}
  #allocation0 [shape = 'u32[]', space=smem, size = 0x4, offset = 0x4, fixed_abs, tag = 'smem constant byte address 0x4 - core index']
  #allocation1 [shape = 'u32[144,128]{1,0:T(1,128)}', space=vmem, size = 0x12000, scoped, tag = 'internal scratch']
  #allocation2 [shape = 'f32[1]{0:T(128)S(6)}', space=smem, size = 0x200, scoped, tag = 'scoped memory for tpu_custom_call.1']
  %s0 = inlined_call_operand.<no memory space> [shape: f32[1], index: 0, kind: input, shape index: {}]
  %s1 = inlined_call_operand.vmem [shape: f32[8,8], index: 1, kind: input, shape index: {}]
  %s2 = inlined_call_operand.vmem [shape: f32[16,8], index: 2, kind: input, shape index: {}]
  %s3 = inlined_call_operand.vmem [shape: f32[6,16], index: 3, kind: input, shape index: {}]
  %s4 = inlined_call_operand.vmem [shape: f32[4,6], index: 4, kind: input, shape index: {}]
  %s5 = inlined_call_operand.hbm [shape: f32[4,8], index: 5, kind: output, shape index: {}]
  %s6 = sld [smem:[#allocation0]]
  $region30: #{tpu_custom_call.1} parent=0
    _
  %s8 = ssub.s32 1, %s6
  %s9 = scalar_select 0, %s8, %s6
  %10 = sst [smem:[#allocation2]] %s0
  $region1: #{tpu_custom_call.1} parent=0
    #allocation3 [shape = 'u8[2048]{0}', space=vmem, size = 0x800, scoped, tag = 'output window, operand 0, single buffered']
    #allocation4 [shape = 's32[1]{0}', space=sflag, size = 0x4, scoped, tag = 'scoped memory for tpu_custom_call.1']
    %11 = vsyncpa [#allocation4], 0
    // Predicated region
    $region2: #{tpu_custom_call.1} parent=1 // pred_check
      _
    $region3: #{tpu_custom_call.1} parent=1 // pred_check_branch
      %13 = sbr.rel (0) target = $region5
    $region4: #{tpu_custom_call.1} parent=1 // pred_region
      _
    $region5: #{tpu_custom_call.1} parent=1 // pred_fallthru
      _
    // Predicated region
    $region6: #{tpu_custom_call.1} parent=1 // pred_check
      _
    $region7: #{tpu_custom_call.1} parent=1 // pred_check_branch
      %15 = sbr.rel (0) target = $region9
    $region8: #{tpu_custom_call.1} parent=1 // pred_region
      _
    $region9: #{tpu_custom_call.1} parent=1 // pred_fallthru
      _
    // Predicated region
    $region10: #{tpu_custom_call.1} parent=1 // pred_check
      _
    $region11: #{tpu_custom_call.1} parent=1 // pred_check_branch
      %17 = sbr.rel (0) target = $region13
    $region12: #{tpu_custom_call.1} parent=1 // pred_region
      _
    $region13: #{tpu_custom_call.1} parent=1 // pred_fallthru
      _
    // Predicated region
    $region14: #{tpu_custom_call.1} parent=1 // pred_check
      _
    $region15: #{tpu_custom_call.1} parent=1 // pred_check_branch
      %19 = sbr.rel (0) target = $region17
    $region16: #{tpu_custom_call.1} parent=1 // pred_region
      _
    $region17: #{tpu_custom_call.1} parent=1 // pred_fallthru
      _
    // Predicated region
    $region18: #{tpu_custom_call.1} parent=1 // pred_check
      _
    $region19: #{tpu_custom_call.1} parent=1 // pred_check_branch
      %21 = sbr.rel (0) target = $region21
    $region20: #{tpu_custom_call.1} parent=1 // pred_region
      _
    $region21: #{tpu_custom_call.1} parent=1 // pred_fallthru
      _
    %v22 = vld [vmem:[%s1] sm:$0xff]
    %v23 = vld [vmem:[%s2] sm:$0xff]
    %v24 = vld [vmem:[%s2 + $0x8] sm:$0xff]
    %vm25 = vcmask 64512
    %v27 = vsel %vm25, %v23, 0
    %v30 = vsel %vm25, %v24, 0
    %32 = vmatprep.subr.mxu0 0.0
    %33 = vmatpush1.msra.mxu0 %v22
    %34 = vmatprep.subr.mxu0 0.0
    %35 = vmatpush1.msra.mxu0 0.0
    %36 = vmatprep.subr.mxu0 0.0
    %37 = vmatpush1.msra.mxu0 0.0
    %38 = vmatprep.subr.mxu0 0.0
    %39 = vmatpush1.msra.mxu0 0.0
    %40 = vmatprep.subr.mxu0 0.0
    %41 = vmatpush1.msra.mxu0 0.0
    %42 = vmatprep.subr.mxu0 0.0
    %43 = vmatpush1.msra.mxu0 0.0
    %44 = vmatprep.subr.mxu0 0.0
    %45 = vmatpush1.msra.mxu0 0.0
    %46 = vmatprep.subr.mxu0 0.0
    %47 = vmatpush1.msra.mxu0 0.0
    %48 = vmatprep.subr.mxu0 0.0
    %49 = vmatpush1.msra.mxu0 0.0
    %50 = vmatprep.subr.mxu0 0.0
    %51 = vmatpush1.msra.mxu0 0.0
    %52 = vmatprep.subr.mxu0 0.0
    %53 = vmatpush1.msra.mxu0 0.0
    %54 = vmatprep.subr.mxu0 0.0
    %55 = vmatpush1.msra.mxu0 0.0
    %56 = vmatprep.subr.mxu0 0.0
    %57 = vmatpush1.msra.mxu0 0.0
    %58 = vmatprep.subr.mxu0 0.0
    %59 = vmatpush1.msra.mxu0 0.0
    %60 = vmatprep.subr.mxu0 0.0
    %61 = vmatpush1.msra.mxu0 0.0
    %62 = vmatprep.subr.mxu0 0.0
    %63 = vmatpush1.msra.mxu0 0.0
    %64 = vmatprep.subr.mxu0 0.0
    %65 = vmatpush1.msra.mxu0 0.0
    %66 = vmatprep.subr.mxu0 0.0
    %67 = vmatpush1.msra.mxu0 0.0
    %68 = vmatprep.subr.mxu0 0.0
    %69 = vmatpush1.msra.mxu0 0.0
    %70 = vmatprep.subr.mxu0 0.0
    %71 = vmatpush1.msra.mxu0 0.0
    %72 = vmatprep.subr.mxu0 0.0
    %73 = vmatpush1.msra.mxu0 0.0
    %74 = vmatprep.subr.mxu0 0.0
    %75 = vmatpush1.msra.mxu0 0.0
    %76 = vmatprep.subr.mxu0 0.0
    %77 = vmatpush1.msra.mxu0 0.0
    %78 = vmatprep.subr.mxu0 0.0
    %79 = vmatpush1.msra.mxu0 0.0
    %80 = vmatprep.subr.mxu0 0.0
    %81 = vmatpush1.msra.mxu0 0.0
    %82 = vmatprep.subr.mxu0 0.0
    %83 = vmatpush1.msra.mxu0 0.0
    %84 = vmatprep.subr.mxu0 0.0
    %85 = vmatpush1.msra.mxu0 0.0
    %86 = vmatprep.subr.mxu0 0.0
    %87 = vmatpush1.msra.mxu0 0.0
    %88 = vmatprep.subr.mxu0 0.0
    %89 = vmatpush1.msra.mxu0 0.0
    %90 = vmatprep.subr.mxu0 0.0
    %91 = vmatpush1.msra.mxu0 0.0
    %92 = vmatprep.subr.mxu0 0.0
    %93 = vmatpush1.msra.mxu0 0.0
    %94 = vmatprep.subr.mxu0 0.0
    %95 = vmatpush1.msra.mxu0 0.0
    %96 = vmatprep.mubr.f32.mxu0 0.0
    %97 = vmatmul.mubr.f32.gmra.mrb[0].mxu0 %v27
    %v98 = vpop.f32.mrb[0].mxu0
    %v99 = vadd.f32 0.0, %v98
    %v100 = vpop.f32.mrb[0].mxu0
    %101 = vmatprep.mubr.f32.mxu0 0.0
    %102 = vmatmul.mubr.f32.gmra.mrb[0].mxu0 %v30
    %v103 = vpop.f32.mrb[0].mxu0
    %v104 = vadd.f32 0.0, %v103
    %v105 = vpop.f32.mrb[0].mxu0
    %106 = vdwg.mxu0
    %v107 = vtanh.pop %v99
    %v108 = vtanh.pop %v104
    %v109 = vld [vmem:[%s3] sm:$0x3f]
    %vm110 = vcmask 130048
    %v112 = vsel %vm110, %v109, 0
    %114 = vmatprep.subr.mxu0 0.0
    %115 = vmatpush1.msra.mxu0 %v107
    %116 = vmatprep.subr.mxu0 0.0
    %117 = vmatpush1.msra.mxu0 %v108
    %118 = vmatprep.subr.mxu0 0.0
    %119 = vmatpush1.msra.mxu0 0.0
    %120 = vmatprep.subr.mxu0 0.0
    %121 = vmatpush1.msra.mxu0 0.0
    %122 = vmatprep.subr.mxu0 0.0
    %123 = vmatpush1.msra.mxu0 0.0
    %124 = vmatprep.subr.mxu0 0.0
    %125 = vmatpush1.msra.mxu0 0.0
    %126 = vmatprep.subr.mxu0 0.0
    %127 = vmatpush1.msra.mxu0 0.0
    %128 = vmatprep.subr.mxu0 0.0
    %129 = vmatpush1.msra.mxu0 0.0
    %130 = vmatprep.subr.mxu0 0.0
    %131 = vmatpush1.msra.mxu0 0.0
    %132 = vmatprep.subr.mxu0 0.0
    %133 = vmatpush1.msra.mxu0 0.0
    %134 = vmatprep.subr.mxu0 0.0
    %135 = vmatpush1.msra.mxu0 0.0
    %136 = vmatprep.subr.mxu0 0.0
    %137 = vmatpush1.msra.mxu0 0.0
    %138 = vmatprep.subr.mxu0 0.0
    %139 = vmatpush1.msra.mxu0 0.0
    %140 = vmatprep.subr.mxu0 0.0
    %141 = vmatpush1.msra.mxu0 0.0
    %142 = vmatprep.subr.mxu0 0.0
    %143 = vmatpush1.msra.mxu0 0.0
    %144 = vmatprep.subr.mxu0 0.0
    %145 = vmatpush1.msra.mxu0 0.0
    %146 = vmatprep.subr.mxu0 0.0
    %147 = vmatpush1.msra.mxu0 0.0
    %148 = vmatprep.subr.mxu0 0.0
    %149 = vmatpush1.msra.mxu0 0.0
    %150 = vmatprep.subr.mxu0 0.0
    %151 = vmatpush1.msra.mxu0 0.0
    %152 = vmatprep.subr.mxu0 0.0
    %153 = vmatpush1.msra.mxu0 0.0
    %154 = vmatprep.subr.mxu0 0.0
    %155 = vmatpush1.msra.mxu0 0.0
    %156 = vmatprep.subr.mxu0 0.0
    %157 = vmatpush1.msra.mxu0 0.0
    %158 = vmatprep.subr.mxu0 0.0
    %159 = vmatpush1.msra.mxu0 0.0
    %160 = vmatprep.subr.mxu0 0.0
    %161 = vmatpush1.msra.mxu0 0.0
    %162 = vmatprep.subr.mxu0 0.0
    %163 = vmatpush1.msra.mxu0 0.0
    %164 = vmatprep.subr.mxu0 0.0
    %165 = vmatpush1.msra.mxu0 0.0
    %166 = vmatprep.subr.mxu0 0.0
    %167 = vmatpush1.msra.mxu0 0.0
    %168 = vmatprep.subr.mxu0 0.0
    %169 = vmatpush1.msra.mxu0 0.0
    %170 = vmatprep.subr.mxu0 0.0
    %171 = vmatpush1.msra.mxu0 0.0
    %172 = vmatprep.subr.mxu0 0.0
    %173 = vmatpush1.msra.mxu0 0.0
    %174 = vmatprep.subr.mxu0 0.0
    %175 = vmatpush1.msra.mxu0 0.0
    %176 = vmatprep.subr.mxu0 0.0
    %177 = vmatpush1.msra.mxu0 0.0
    %178 = vmatprep.mubr.f32.mxu0 0.0
    %179 = vmatmul.mubr.f32.gmra.mrb[0].mxu0 %v112
    %v180 = vpop.f32.mrb[0].mxu0
    %v181 = vadd.f32 0.0, %v180
    %v182 = vpop.f32.mrb[0].mxu0
    %183 = vdwg.mxu0
    %v184 = vtanh.pop %v181
    %v185 = vld [vmem:[%s4] sm:$0xf]
    %vm186 = vcmask 48128
    %v188 = vsel %vm186, %v185, 0
    %vm190 = vcmask 1045504
    %v192 = vsel %vm190, %v184, 0
    %194 = vmatprep.subr.mxu0 0.0
    %195 = vmatpush1.msra.mxu0 %v192
    %196 = vmatprep.subr.mxu0 0.0
    %197 = vmatpush1.msra.mxu0 0.0
    %198 = vmatprep.subr.mxu0 0.0
    %199 = vmatpush1.msra.mxu0 0.0
    %200 = vmatprep.subr.mxu0 0.0
    %201 = vmatpush1.msra.mxu0 0.0
    %202 = vmatprep.subr.mxu0 0.0
    %203 = vmatpush1.msra.mxu0 0.0
    %204 = vmatprep.subr.mxu0 0.0
    %205 = vmatpush1.msra.mxu0 0.0
    %206 = vmatprep.subr.mxu0 0.0
    %207 = vmatpush1.msra.mxu0 0.0
    %208 = vmatprep.subr.mxu0 0.0
    %209 = vmatpush1.msra.mxu0 0.0
    %210 = vmatprep.subr.mxu0 0.0
    %211 = vmatpush1.msra.mxu0 0.0
    %212 = vmatprep.subr.mxu0 0.0
    %213 = vmatpush1.msra.mxu0 0.0
    %214 = vmatprep.subr.mxu0 0.0
    %215 = vmatpush1.msra.mxu0 0.0
    %216 = vmatprep.subr.mxu0 0.0
    %217 = vmatpush1.msra.mxu0 0.0
    %218 = vmatprep.subr.mxu0 0.0
    %219 = vmatpush1.msra.mxu0 0.0
    %220 = vmatprep.subr.mxu0 0.0
    %221 = vmatpush1.msra.mxu0 0.0
    %222 = vmatprep.subr.mxu0 0.0
    %223 = vmatpush1.msra.mxu0 0.0
    %224 = vmatprep.subr.mxu0 0.0
    %225 = vmatpush1.msra.mxu0 0.0
    %226 = vmatprep.subr.mxu0 0.0
    %227 = vmatpush1.msra.mxu0 0.0
    %228 = vmatprep.subr.mxu0 0.0
    %229 = vmatpush1.msra.mxu0 0.0
    %230 = vmatprep.subr.mxu0 0.0
    %231 = vmatpush1.msra.mxu0 0.0
    %232 = vmatprep.subr.mxu0 0.0
    %233 = vmatpush1.msra.mxu0 0.0
    %234 = vmatprep.subr.mxu0 0.0
    %235 = vmatpush1.msra.mxu0 0.0
    %236 = vmatprep.subr.mxu0 0.0
    %237 = vmatpush1.msra.mxu0 0.0
    %238 = vmatprep.subr.mxu0 0.0
    %239 = vmatpush1.msra.mxu0 0.0
    %240 = vmatprep.subr.mxu0 0.0
    %241 = vmatpush1.msra.mxu0 0.0
    %242 = vmatprep.subr.mxu0 0.0
    %243 = vmatpush1.msra.mxu0 0.0
    %244 = vmatprep.subr.mxu0 0.0
    %245 = vmatpush1.msra.mxu0 0.0
    %246 = vmatprep.subr.mxu0 0.0
    %247 = vmatpush1.msra.mxu0 0.0
    %248 = vmatprep.subr.mxu0 0.0
    %249 = vmatpush1.msra.mxu0 0.0
    %250 = vmatprep.subr.mxu0 0.0
    %251 = vmatpush1.msra.mxu0 0.0
    %252 = vmatprep.subr.mxu0 0.0
    %253 = vmatpush1.msra.mxu0 0.0
    %254 = vmatprep.subr.mxu0 0.0
    %255 = vmatpush1.msra.mxu0 0.0
    %256 = vmatprep.subr.mxu0 0.0
    %257 = vmatpush1.msra.mxu0 0.0
    %258 = vmatprep.mubr.f32.mxu0 0.0
    %259 = vmatmul.mubr.f32.gmra.mrb[0].mxu0 %v188
    %v260 = vpop.f32.mrb[0].mxu0
    %v261 = vadd.f32 0.0, %v260
    %v262 = vpop.f32.mrb[0].mxu0
    %263 = vdwg.mxu0
    %v264 = vtanh.pop %v261
    %s265 = sld [smem:[#allocation2]]
    %v266 = vstv %s265
    %v267 = vmul.f32 %v266, %v264
    %vm268 = vcmask 60416
    %269 = vst.msk [vmem:[#allocation3] sm:$0xf] %vm268, %v267
    // Predicated region
    $region22: #{tpu_custom_call.1} parent=1 // pred_check
      _
    $region23: #{tpu_custom_call.1} parent=1 // pred_check_branch
      %271 = sbr.rel (0) target = $region25
    $region24: #{tpu_custom_call.1} parent=1 // pred_region
      %s273 = ssub.s32 64, 64
      %274 = vsyncadd [#allocation4], %s273
      %s276 = sshll.u32 [#allocation3], 4
      %s277 = int_to_ptr.vmem [resolvable:$true] %s276
      %279 = dma.vmem_to_hbm [thread:$0]  %s277, 64, %s5, [#allocation4]
    $region25: #{tpu_custom_call.1} parent=1 // pred_fallthru
      _
    // Predicated region
    $region26: #{tpu_custom_call.1} parent=1 // pred_check
      _
    $region27: #{tpu_custom_call.1} parent=1 // pred_check_branch
      %281 = sbr.rel (0) target = $region29
    $region28: #{tpu_custom_call.1} parent=1 // pred_region
      %282 = dma.done [#allocation4], 64
    $region29: #{tpu_custom_call.1} parent=1 // pred_fallthru
      _
    %283 = vsyncpa [#allocation4], 1

</llo_original>
